<compile_context>
chip_gen: v5e
topology: v5e:2x2
jax: 0.10.0
libtpu: 0.0.40
codegen_flags: <defaults>
</compile_context>

<pallas_src>
import numpy as np
import jax
import jax.numpy as jnp
from jax.experimental import pallas as pl
from jax.experimental.pallas import tpu as pltpu

EMB_SIZE = 32     # emb_size
WORD_NUM = 64     # word_num (vocab size)
NUM_TAGS = 16     # tags_weight rows
NSAMPLED = 8      # nsampled (unused, see TODO above)
MAX_SPANS = 8     # fixed span-count padding (avoids per-batch recompiles)


# ---------------------------------------------------------------------------
# Fused forward kernel (single invocation, everything vectorized)
#   VMEM inputs : ids (2N,1) i32   resolved token ids ([start ids ; end ids])
#                 tags (N,1) i32, mask (N,1) f32
#                 emb_table (V,E), w_bd (2E,2E) block-diag fw/bw, b_cat (1,2E),
#                 tags_weight_t (E,T)
#   output      : loss (1,1) f32 in SMEM
# ---------------------------------------------------------------------------
def _fused_kernel(ids_ref, tag_ref, msk_ref,          # small VMEM int/float inputs
                  emb_ref, w_ref, b_ref, wt_ref,      # VMEM weights
                  loss_ref):                          # SMEM (1,1) output
    nmax = tag_ref.shape[0]
    v, e = emb_ref.shape
    t = wt_ref.shape[1]

    # ---- embedding gather as ONE MXU matmul: (2N,V) one-hot @ (V,E) ---------
    vocab_iota = jax.lax.broadcasted_iota(jnp.int32, (2 * nmax, v), 1)
    sel = (vocab_iota == ids_ref[...]).astype(jnp.float32)            # (2N, V)
    g = jnp.dot(sel, emb_ref[...],
                preferred_element_type=jnp.float32)                   # (2N, E)

    # ---- lane-packed encoder input (N, 2E) = [emb[st] | emb[et]] ------------
    x = jnp.concatenate([g[:nmax], g[nmax:]], axis=-1)                # (N, 2E)

    # ---- fused fw/bw encoder: block-diagonal (2E,2E) weight, one matmul -----
    y = jnp.tanh(jnp.dot(x, w_ref[...],
                         preferred_element_type=jnp.float32)
                 + b_ref[...])                                        # (N, 2E)
    word_embs = y[:, :e] + y[:, e:]                                   # (N, E)

    # ---- tag logits + masked softmax cross-entropy mean ---------------------
    logits = jnp.dot(word_embs, wt_ref[...],
                     preferred_element_type=jnp.float32)              # (N, T)
    m = jnp.max(logits, axis=-1, keepdims=True)
    lse = m + jnp.log(jnp.sum(jnp.exp(logits - m), axis=-1, keepdims=True))

    tag_iota = jax.lax.broadcasted_iota(jnp.int32, (nmax, t), 1)
    onehot = (tag_iota == tag_ref[...]).astype(jnp.float32)           # 1 VPU pass
    true_logit = jnp.sum(onehot * logits, axis=-1, keepdims=True)

    per_span = (lse - true_logit) * msk_ref[...]                      # (N, 1)
    loss_ref[0, 0] = jnp.sum(per_span) / jnp.sum(msk_ref[...])        # masked mean


# ---------------------------------------------------------------------------
# Forward wrapper (host-side span bookkeeping + weight prep; one pallas_call)
# ---------------------------------------------------------------------------
def smelo_forward(params, batch_sentence, batch_tags_with_idx, keep_prop,
                  max_spans=MAX_SPANS):
    del keep_prop  # TODO(synk): dropout omitted (eval mode)
    B, S = batch_sentence.shape
    E = params["emb_table"].shape[1]
    T = params["tags_weight"].shape[0]

    # Python-side span/index bookkeeping (mirrors the torch loop; the original
    # appends the list `batch_tags` by mistake — intended semantics used here).
    idx_st, idx_et, tags = [], [], []
    for i, spans in enumerate(batch_tags_with_idx):
        offset = i * S
        for s, e, tag in spans:
            idx_st.append(offset + s)
            idx_et.append(offset + e)
            tags.append(int(tag))
    n = len(tags)
    if n == 0:                      # guard: empty-span batch would NaN the mean
        return jnp.float32(0.0)
    assert n <= max_spans, f"{n} spans exceed MAX_SPANS={max_spans}"
    assert all(0 <= tg < T for tg in tags), "tag id out of range"

    # Pad to a fixed span count (no recompile when n changes batch-to-batch).
    pad = max_spans - n
    idx_st_p = np.asarray(idx_st + [0] * pad, np.int32)
    idx_et_p = np.asarray(idx_et + [0] * pad, np.int32)
    tags_p = np.asarray(tags + [0] * pad, np.int32).reshape(max_spans, 1)
    mask_p = np.asarray([1.0] * n + [0.0] * pad, np.float32).reshape(max_spans, 1)

    # Resolve the double indirection (span index -> token id) with a trivial
    # XLA gather so the kernel never chases SMEM pointers.
    tok_flat = batch_sentence.reshape(-1).astype(jnp.int32)
    span_idx = jnp.asarray(np.concatenate([idx_st_p, idx_et_p]), jnp.int32)
    token_ids = jnp.take(tok_flat, span_idx, axis=0).reshape(2 * max_spans, 1)

    # Host-side weight prep (would be precomputed once in a real trainer):
    # block-diagonal fw/bw encoder weight, fused bias, pre-transposed tag weight.
    zeros = jnp.zeros((E, E), jnp.float32)
    w_bd = jnp.block([[params["w_fw"], zeros], [zeros, params["w_bw"]]])   # (2E,2E)
    b_cat = jnp.concatenate([params["b_fw"], params["b_bw"]], axis=-1)     # (1,2E)
    wt_t = params["tags_weight"].T                                         # (E,T)

    vmem = pl.BlockSpec(memory_space=pltpu.MemorySpace.VMEM)
    loss = pl.pallas_call(
        _fused_kernel,
        out_shape=jax.ShapeDtypeStruct((1, 1), jnp.float32),
        in_specs=[vmem] * 7,
        out_specs=pl.BlockSpec(memory_space=pltpu.MemorySpace.SMEM),
        compiler_params=pltpu.CompilerParams(vmem_limit_bytes=32 * 1024 * 1024),
    )(token_ids, jnp.asarray(tags_p), jnp.asarray(mask_p),
      params["emb_table"], w_bd, b_cat, wt_t)
    return loss[0, 0]


# ---------------------------------------------------------------------------
# Pure-JAX reference (correctness check in __main__)
# ---------------------------------------------------------------------------
def _reference_forward(params, batch_sentence, batch_tags_with_idx):
    B, S = batch_sentence.shape
    hp = jax.lax.Precision.HIGHEST
    idx_st, idx_et, tags = [], [], []
    for i, spans in enumerate(batch_tags_with_idx):
        offset = i * S
        for s, e, tag in spans:
            idx_st.append(offset + s)
            idx_et.append(offset + e)
            tags.append(int(tag))
    idx_st = jnp.asarray(idx_st, jnp.int32)
    idx_et = jnp.asarray(idx_et, jnp.int32)
    tag_arr = jnp.asarray(tags, jnp.int32)

    x_emb = jnp.take(params["emb_table"], batch_sentence.reshape(-1), axis=0)
    fw = jnp.tanh(jnp.dot(x_emb, params["w_fw"], precision=hp) + params["b_fw"])
    bw = jnp.tanh(jnp.dot(x_emb, params["w_bw"], precision=hp) + params["b_bw"])
    word_embs = jnp.take(fw, idx_st, axis=0) + jnp.take(bw, idx_et, axis=0)
    logits = jnp.dot(word_embs, params["tags_weight"].T, precision=hp)
    lse = jax.scipy.special.logsumexp(logits, axis=-1)
    true_logit = jnp.take_along_axis(logits, tag_arr[:, None], axis=-1)[:, 0]
    return jnp.mean(lse - true_logit)


if __name__ == "__main__":
    B, S = 2, 8

    key = jax.random.PRNGKey(0)
    k1, k2, k3, k4, k5, k6, k7 = jax.random.split(key, 7)
    params = {
        "emb_table": 0.1 * jax.random.normal(k1, (WORD_NUM, EMB_SIZE), jnp.float32),
        "w_fw": 0.1 * jax.random.normal(k2, (EMB_SIZE, EMB_SIZE), jnp.float32),
        "w_bw": 0.1 * jax.random.normal(k3, (EMB_SIZE, EMB_SIZE), jnp.float32),
        "b_fw": 0.1 * jax.random.normal(k4, (1, EMB_SIZE), jnp.float32),
        "b_bw": 0.1 * jax.random.normal(k5, (1, EMB_SIZE), jnp.float32),
        "tags_weight": 0.1 * jax.random.normal(k6, (NUM_TAGS, EMB_SIZE), jnp.float32),
    }

    batch_sentence = jax.random.randint(k7, (B, S), 0, WORD_NUM, dtype=jnp.int32)
    # batch_tags_with_idx: per sentence, list of (start, end, tag) spans
    batch_tags_with_idx = [
        [(0, 3, 2), (4, 7, 5)],
        [(1, 4, 7), (5, 7, 11)],
    ]
    keep_prop = 1.0

    loss = smelo_forward(params, batch_sentence, batch_tags_with_idx, keep_prop)
    jax.block_until_ready(loss)

    ref = _reference_forward(params, batch_sentence, batch_tags_with_idx)
    jax.block_until_ready(ref)

    assert loss.shape == () and bool(jnp.isfinite(loss))
    # Tightened from 2e-2; kept at 1e-3 (not 1e-5) to stay robust to MXU f32
    # multi-pass rounding vs. the HIGHEST-precision XLA reference — still far
    # below any indexing/layout error, which would be O(0.1..1).
    assert jnp.allclose(loss, ref, rtol=1e-3, atol=1e-3), (loss, ref)
    print("KERNEL_OK")
</pallas_src>

<mosaic_0001>
module attributes {stable_mosaic.version = 11 : i64} {
  func.func @_fused_kernel(%arg0: memref<16x1xi32, #tpu.memory_space<vmem>>, %arg1: memref<8x1xi32, #tpu.memory_space<vmem>>, %arg2: memref<8x1xf32, #tpu.memory_space<vmem>>, %arg3: memref<64x32xf32, #tpu.memory_space<vmem>>, %arg4: memref<64x64xf32, #tpu.memory_space<vmem>>, %arg5: memref<1x64xf32, #tpu.memory_space<vmem>>, %arg6: memref<32x16xf32, #tpu.memory_space<vmem>>, %arg7: memref<1x1xf32, #tpu.memory_space<smem>>) attributes {dimension_semantics = [], scalar_prefetch = 0 : i64, scratch_operands = 0 : i64, tpu.core_type = #tpu.core_type<tc>} {
    %0 = tpu.iota {dimensions = array<i32: 1>} : vector<16x64xi32>
    %c0 = arith.constant 0 : index
    %c0_0 = arith.constant 0 : index
    %1 = vector.load %arg0[%c0, %c0_0] : memref<16x1xi32, #tpu.memory_space<vmem>>, vector<16x1xi32>
    %2 = vector.broadcast %1 : vector<16x1xi32> to vector<16x64xi32>
    %3 = arith.cmpi eq, %0, %2 : vector<16x64xi32>
    %4 = arith.extui %3 : vector<16x64xi1> to vector<16x64xi32>
    %5 = arith.sitofp %4 : vector<16x64xi32> to vector<16x64xf32>
    %c0_1 = arith.constant 0 : index
    %c0_2 = arith.constant 0 : index
    %6 = vector.load %arg3[%c0_1, %c0_2] : memref<64x32xf32, #tpu.memory_space<vmem>>, vector<64x32xf32>
    %cst = arith.constant dense<0.000000e+00> : vector<16x32xf32>
    %7 = tpu.matmul %5, %6, %cst {dimension_numbers = #tpu.dot_dimension_numbers<[1], [0], [0], [1], [0, 0, 1, 1], [], []>} : vector<16x64xf32>, vector<64x32xf32>, vector<16x32xf32> -> vector<16x32xf32>
    %8 = vector.extract_strided_slice %7 {offsets = [0, 0], sizes = [8, 32], strides = [1, 1]} : vector<16x32xf32> to vector<8x32xf32>
    %9 = vector.extract_strided_slice %7 {offsets = [8, 0], sizes = [8, 32], strides = [1, 1]} : vector<16x32xf32> to vector<8x32xf32>
    %10 = tpu.concatenate %8, %9 in 1 : vector<8x32xf32>, vector<8x32xf32> -> vector<8x64xf32>
    %c0_3 = arith.constant 0 : index
    %c0_4 = arith.constant 0 : index
    %11 = vector.load %arg4[%c0_3, %c0_4] : memref<64x64xf32, #tpu.memory_space<vmem>>, vector<64x64xf32>
    %cst_5 = arith.constant dense<0.000000e+00> : vector<8x64xf32>
    %12 = tpu.matmul %10, %11, %cst_5 {dimension_numbers = #tpu.dot_dimension_numbers<[1], [0], [0], [1], [0, 0, 1, 1], [], []>} : vector<8x64xf32>, vector<64x64xf32>, vector<8x64xf32> -> vector<8x64xf32>
    %c0_6 = arith.constant 0 : index
    %c0_7 = arith.constant 0 : index
    %13 = vector.load %arg5[%c0_6, %c0_7] : memref<1x64xf32, #tpu.memory_space<vmem>>, vector<1x64xf32>
    %14 = vector.broadcast %13 : vector<1x64xf32> to vector<8x64xf32>
    %15 = arith.addf %12, %14 : vector<8x64xf32>
    %16 = math.tanh %15 : vector<8x64xf32>
    %17 = vector.extract_strided_slice %16 {offsets = [0, 0], sizes = [8, 32], strides = [1, 1]} : vector<8x64xf32> to vector<8x32xf32>
    %18 = vector.extract_strided_slice %16 {offsets = [0, 32], sizes = [8, 32], strides = [1, 1]} : vector<8x64xf32> to vector<8x32xf32>
    %19 = arith.addf %17, %18 : vector<8x32xf32>
    %c0_8 = arith.constant 0 : index
    %c0_9 = arith.constant 0 : index
    %20 = vector.load %arg6[%c0_8, %c0_9] : memref<32x16xf32, #tpu.memory_space<vmem>>, vector<32x16xf32>
    %cst_10 = arith.constant dense<0.000000e+00> : vector<8x16xf32>
    %21 = tpu.matmul %19, %20, %cst_10 {dimension_numbers = #tpu.dot_dimension_numbers<[1], [0], [0], [1], [0, 0, 1, 1], [], []>} : vector<8x32xf32>, vector<32x16xf32>, vector<8x16xf32> -> vector<8x16xf32>
    %cst_11 = arith.constant dense<0xFF800000> : vector<8xf32>
    %22 = vector.multi_reduction <maximumf>, %21, %cst_11 [1] : vector<8x16xf32> to vector<8xf32>
    %23 = vector.shape_cast %22 : vector<8xf32> to vector<8x1xf32>
    %24 = vector.broadcast %23 : vector<8x1xf32> to vector<8x16xf32>
    %25 = arith.subf %21, %24 : vector<8x16xf32>
    %26 = math.exp %25 : vector<8x16xf32>
    %cst_12 = arith.constant dense<0.000000e+00> : vector<8xf32>
    %27 = vector.multi_reduction <add>, %26, %cst_12 [1] : vector<8x16xf32> to vector<8xf32>
    %28 = vector.shape_cast %27 : vector<8xf32> to vector<8x1xf32>
    %29 = math.log %28 : vector<8x1xf32>
    %30 = arith.addf %23, %29 : vector<8x1xf32>
    %31 = tpu.iota {dimensions = array<i32: 1>} : vector<8x16xi32>
    %c0_13 = arith.constant 0 : index
    %c0_14 = arith.constant 0 : index
    %32 = vector.load %arg1[%c0_13, %c0_14] : memref<8x1xi32, #tpu.memory_space<vmem>>, vector<8x1xi32>
    %33 = vector.broadcast %32 : vector<8x1xi32> to vector<8x16xi32>
    %34 = arith.cmpi eq, %31, %33 : vector<8x16xi32>
    %35 = arith.extui %34 : vector<8x16xi1> to vector<8x16xi32>
    %36 = arith.sitofp %35 : vector<8x16xi32> to vector<8x16xf32>
    %37 = arith.mulf %36, %21 : vector<8x16xf32>
    %cst_15 = arith.constant dense<0.000000e+00> : vector<8xf32>
    %38 = vector.multi_reduction <add>, %37, %cst_15 [1] : vector<8x16xf32> to vector<8xf32>
    %39 = vector.shape_cast %38 : vector<8xf32> to vector<8x1xf32>
    %40 = arith.subf %30, %39 : vector<8x1xf32>
    %c0_16 = arith.constant 0 : index
    %c0_17 = arith.constant 0 : index
    %41 = vector.load %arg2[%c0_16, %c0_17] : memref<8x1xf32, #tpu.memory_space<vmem>>, vector<8x1xf32>
    %42 = arith.mulf %40, %41 : vector<8x1xf32>
    %43 = vector.shape_cast %42 : vector<8x1xf32> to vector<1x8x1xf32>
    %cst_18 = arith.constant dense<0.000000e+00> : vector<1xf32>
    %44 = vector.multi_reduction <add>, %43, %cst_18 [1, 2] : vector<1x8x1xf32> to vector<1xf32>
    %45 = vector.shape_cast %44 : vector<1xf32> to vector<1x1x1xf32>
    %46 = vector.extract %45[0, 0, 0] : f32 from vector<1x1x1xf32>
    %c0_19 = arith.constant 0 : index
    %c0_20 = arith.constant 0 : index
    %47 = vector.load %arg2[%c0_19, %c0_20] : memref<8x1xf32, #tpu.memory_space<vmem>>, vector<8x1xf32>
    %48 = vector.shape_cast %47 : vector<8x1xf32> to vector<1x8x1xf32>
    %cst_21 = arith.constant dense<0.000000e+00> : vector<1xf32>
    %49 = vector.multi_reduction <add>, %48, %cst_21 [1, 2] : vector<1x8x1xf32> to vector<1xf32>
    %50 = vector.shape_cast %49 : vector<1xf32> to vector<1x1x1xf32>
    %51 = vector.extract %50[0, 0, 0] : f32 from vector<1x1x1xf32>
    %52 = arith.divf %46, %51 : f32
    %c0_22 = arith.constant 0 : index
    %c0_23 = arith.constant 0 : index
    %53 = memref.load %arg7[%c0_22, %c0_23] : memref<1x1xf32, #tpu.memory_space<smem>>
    memref.store %52, %arg7[%c0_22, %c0_23] : memref<1x1xf32, #tpu.memory_space<smem>>
    return
  }
}

</mosaic_0001>

<llo_original>
// kernel: tpu_custom_call.1
$region0: #{tpu_custom_call.1}
  #allocation0 [shape = 'u32[]', space=smem, size = 0x4, offset = 0x4, fixed_abs, tag = 'smem constant byte address 0x4 - core index']
  #allocation1 [shape = 'u32[72,128]{1,0:T(1,128)}', space=vmem, size = 0x9000, scoped, tag = 'internal scratch']
  %s0 = inlined_call_operand.vmem [shape: s32[16,1], index: 0, kind: input, shape index: {}]
  %s1 = inlined_call_operand.vmem [shape: s32[8,1], index: 1, kind: input, shape index: {}]
  %s2 = inlined_call_operand.vmem [shape: f32[8,1], index: 2, kind: input, shape index: {}]
  %s3 = inlined_call_operand.vmem [shape: f32[64,32], index: 3, kind: input, shape index: {}]
  %s4 = inlined_call_operand.vmem [shape: f32[64,64], index: 4, kind: input, shape index: {}]
  %s5 = inlined_call_operand.vmem [shape: f32[1,64], index: 5, kind: input, shape index: {}]
  %s6 = inlined_call_operand.vmem [shape: f32[32,16], index: 6, kind: input, shape index: {}]
  %s7 = inlined_call_operand.hbm [shape: f32[1,1], index: 7, kind: output, shape index: {}]
  %s8 = sld [smem:[#allocation0]]
  $region38: #{tpu_custom_call.1} parent=0
    _
  %s10 = ssub.s32 1, %s8
  %s11 = scalar_select 0, %s10, %s8
  $region1: #{tpu_custom_call.1} parent=0
    #allocation2 [shape = 'u8[512]{0}', space=smem, size = 0x200, scoped, tag = 'output window, operand 0, single buffered']
    #allocation3 [shape = 's32[1]{0}', space=sflag, size = 0x4, scoped, tag = 'scoped memory for tpu_custom_call.1']
    %12 = vsyncpa [#allocation3], 0
    // Predicated region
    $region2: #{tpu_custom_call.1} parent=1 // pred_check
      _
    $region3: #{tpu_custom_call.1} parent=1 // pred_check_branch
      %14 = sbr.rel (0) target = $region5
    $region4: #{tpu_custom_call.1} parent=1 // pred_region
      _
    $region5: #{tpu_custom_call.1} parent=1 // pred_fallthru
      _
    // Predicated region
    $region6: #{tpu_custom_call.1} parent=1 // pred_check
      _
    $region7: #{tpu_custom_call.1} parent=1 // pred_check_branch
      %16 = sbr.rel (0) target = $region9
    $region8: #{tpu_custom_call.1} parent=1 // pred_region
      _
    $region9: #{tpu_custom_call.1} parent=1 // pred_fallthru
      _
    // Predicated region
    $region10: #{tpu_custom_call.1} parent=1 // pred_check
      _
    $region11: #{tpu_custom_call.1} parent=1 // pred_check_branch
      %18 = sbr.rel (0) target = $region13
    $region12: #{tpu_custom_call.1} parent=1 // pred_region
      _
    $region13: #{tpu_custom_call.1} parent=1 // pred_fallthru
      _
    // Predicated region
    $region14: #{tpu_custom_call.1} parent=1 // pred_check
      _
    $region15: #{tpu_custom_call.1} parent=1 // pred_check_branch
      %20 = sbr.rel (0) target = $region17
    $region16: #{tpu_custom_call.1} parent=1 // pred_region
      _
    $region17: #{tpu_custom_call.1} parent=1 // pred_fallthru
      _
    // Predicated region
    $region18: #{tpu_custom_call.1} parent=1 // pred_check
      _
    $region19: #{tpu_custom_call.1} parent=1 // pred_check_branch
      %22 = sbr.rel (0) target = $region21
    $region20: #{tpu_custom_call.1} parent=1 // pred_region
      _
    $region21: #{tpu_custom_call.1} parent=1 // pred_fallthru
      _
    // Predicated region
    $region22: #{tpu_custom_call.1} parent=1 // pred_check
      _
    $region23: #{tpu_custom_call.1} parent=1 // pred_check_branch
      %24 = sbr.rel (0) target = $region25
    $region24: #{tpu_custom_call.1} parent=1 // pred_region
      _
    $region25: #{tpu_custom_call.1} parent=1 // pred_fallthru
      _
    // Predicated region
    $region26: #{tpu_custom_call.1} parent=1 // pred_check
      _
    $region27: #{tpu_custom_call.1} parent=1 // pred_check_branch
      %26 = sbr.rel (0) target = $region29
    $region28: #{tpu_custom_call.1} parent=1 // pred_region
      _
    $region29: #{tpu_custom_call.1} parent=1 // pred_fallthru
      _
    %v27 = vlaneseq
    %v28 = vand.u32 %v27, 127
    %v29 = vld [vmem:[%s0] sm:$0xff]
    %v30 = vld [vmem:[%s0 + $0x8] sm:$0xff]
    %31 = vset.pattern.permute.xlu0 0
    %32 = vperm.xlu0 %31, %v29
    %v33 = vpop.permute.xlu0 %32
    %34 = vset.pattern.permute.xlu0 0
    %35 = vperm.xlu0 %34, %v30
    %v36 = vpop.permute.xlu0 %35
    %vm37 = vcmp.eq.s32.totalorder %v28, %v33
    %vm38 = vcmp.eq.s32.totalorder %v28, %v36
    %v39 = vsel %vm37, 1, 0
    %v40 = vsel %vm38, 1, 0
    %v41 = vcvt.s32.f32 %v39
    %v42 = vcvt.s32.f32 %v40
    %v43 = vld [vmem:[%s3] sm:$0xff]
    %v44 = vld [vmem:[%s3 + $0x8] sm:$0xff]
    %v45 = vld [vmem:[%s3 + $0x10] sm:$0xff]
    %v46 = vld [vmem:[%s3 + $0x18] sm:$0xff]
    %v47 = vld [vmem:[%s3 + $0x20] sm:$0xff]
    %v48 = vld [vmem:[%s3 + $0x28] sm:$0xff]
    %v49 = vld [vmem:[%s3 + $0x30] sm:$0xff]
    %v50 = vld [vmem:[%s3 + $0x38] sm:$0xff]
    %vm51 = vcmask 523264
    %v53 = vsel %vm51, %v41, 0
    %v56 = vsel %vm51, %v42, 0
    %58 = vmatpush.msra.mxu0 0.0
    %59 = vmatpush.msra.mxu0 0.0
    %60 = vmatpush.msra.mxu0 0.0
    %61 = vmatpush.msra.mxu0 0.0
    %62 = vmatpush.msra.mxu0 0.0
    %63 = vmatpush.msra.mxu0 0.0
    %64 = vmatpush.msra.mxu0 0.0
    %65 = vmatpush.msra.mxu0 0.0
    %66 = vmatpush.msra.mxu0 %v50
    %67 = vmatpush.msra.mxu0 %v49
    %68 = vmatpush.msra.mxu0 %v48
    %69 = vmatpush.msra.mxu0 %v47
    %70 = vmatpush.msra.mxu0 %v46
    %71 = vmatpush.msra.mxu0 %v45
    %72 = vmatpush.msra.mxu0 %v44
    %73 = vmatpush.msra.mxu0 %v43
    %74 = vmatmul.f32.gmra.mxu0 %v53
    %v75 = vpop.f32.mrf.mxu0
    %v76 = vadd.f32 0.0, %v75
    %77 = vmatmul.f32.gmra.mxu0 %v56
    %v78 = vpop.f32.mrf.mxu0
    %v79 = vadd.f32 0.0, %v78
    %80 = vdwg.mxu0
    %82 = vrot.lane.b32.xlu0 %v79, 32
    %v83 = vpop.permute.xlu0 %82
    %vm85 = vcmask 261120
    %v86 = vsel %vm85, %v76, %v83
    %v87 = vld [vmem:[%s4] sm:$0xff]
    %v88 = vld [vmem:[%s4 + $0x8] sm:$0xff]
    %v89 = vld [vmem:[%s4 + $0x10] sm:$0xff]
    %v90 = vld [vmem:[%s4 + $0x18] sm:$0xff]
    %v91 = vld [vmem:[%s4 + $0x20] sm:$0xff]
    %v92 = vld [vmem:[%s4 + $0x28] sm:$0xff]
    %v93 = vld [vmem:[%s4 + $0x30] sm:$0xff]
    %v94 = vld [vmem:[%s4 + $0x38] sm:$0xff]
    %v95 = vld [vmem:[%s5] sm:$0x1]
    %v97 = vperm.slane %v95, 0
    %v100 = vsel %vm51, %v86, 0
    %102 = vmatpush.msra.mxu0 0.0
    %103 = vmatpush.msra.mxu0 0.0
    %104 = vmatpush.msra.mxu0 0.0
    %105 = vmatpush.msra.mxu0 0.0
    %106 = vmatpush.msra.mxu0 0.0
    %107 = vmatpush.msra.mxu0 0.0
    %108 = vmatpush.msra.mxu0 0.0
    %109 = vmatpush.msra.mxu0 0.0
    %110 = vmatpush.msra.mxu0 %v94
    %111 = vmatpush.msra.mxu0 %v93
    %112 = vmatpush.msra.mxu0 %v92
    %113 = vmatpush.msra.mxu0 %v91
    %114 = vmatpush.msra.mxu0 %v90
    %115 = vmatpush.msra.mxu0 %v89
    %116 = vmatpush.msra.mxu0 %v88
    %117 = vmatpush.msra.mxu0 %v87
    %118 = vmatmul.f32.gmra.mxu0 %v100
    %v119 = vpop.f32.mrf.mxu0
    %v120 = vadd.f32 %v97, %v119
    %121 = vdwg.mxu0
    %v122 = vtanh.pop %v120
    %124 = vrot.lane.b32.xlu0 %v122, 96
    %v125 = vpop.permute.xlu0 %124
    %v127 = vadd.f32 %v122, %v125
    %v128 = vld [vmem:[%s6] sm:$0xff]
    %v129 = vld [vmem:[%s6 + $0x8] sm:$0xff]
    %v130 = vld [vmem:[%s6 + $0x10] sm:$0xff]
    %v131 = vld [vmem:[%s6 + $0x18] sm:$0xff]
    %v133 = vsel %vm85, %v127, 0
    %135 = vmatpush.msra.mxu0 0.0
    %136 = vmatpush.msra.mxu0 0.0
    %137 = vmatpush.msra.mxu0 0.0
    %138 = vmatpush.msra.mxu0 0.0
    %139 = vmatpush.msra.mxu0 0.0
    %140 = vmatpush.msra.mxu0 0.0
    %141 = vmatpush.msra.mxu0 0.0
    %142 = vmatpush.msra.mxu0 0.0
    %143 = vmatpush.msra.mxu0 0.0
    %144 = vmatpush.msra.mxu0 0.0
    %145 = vmatpush.msra.mxu0 0.0
    %146 = vmatpush.msra.mxu0 0.0
    %147 = vmatpush.msra.mxu0 %v131
    %148 = vmatpush.msra.mxu0 %v130
    %149 = vmatpush.msra.mxu0 %v129
    %150 = vmatpush.msra.mxu0 %v128
    %151 = vmatmul.f32.gmra.mxu0 %v133
    %v152 = vpop.f32.mrf.mxu0
    %v153 = vadd.f32 0.0, %v152
    %154 = vdwg.mxu0
    %vm155 = vcmask 130048
    %v156 = vsel %vm155, %v153, -inf
    %157 = vmax.xlane.f32.xlu0 %v156
    %v158 = vpop.xlane.xlu0 %157
    %v159 = vsub.f32 %v153, %v158
    %v160 = vmul.f32 %v159, 1.442695
    %v161 = vpow.pop %v160
    %v162 = vsel %vm155, %v161, 0.0
    %163 = vadd.xlane.f32.xlu0 %v162
    %v164 = vpop.xlane.xlu0 %163
    %v165 = vlog2.pop %v164
    %v166 = vmul.f32 %v165, 0.6931472
    %v167 = vadd.f32 %v158, %v166
    %v168 = vld [vmem:[%s1] sm:$0xff]
    %169 = vset.pattern.permute.xlu0 0
    %170 = vperm.xlu0 %169, %v168
    %v171 = vpop.permute.xlu0 %170
    %vm172 = vcmp.eq.s32.totalorder %v28, %v171
    %v173 = vsel %vm172, 1, 0
    %v174 = vcvt.s32.f32 %v173
    %v175 = vmul.f32 %v174, %v153
    %v176 = vsel %vm155, %v175, 0.0
    %177 = vadd.xlane.f32.xlu0 %v176
    %v178 = vpop.xlane.xlu0 %177
    %v179 = vsub.f32 %v167, %v178
    %v180 = vld [vmem:[%s2] sm:$0xff]
    %v181 = vmul.f32 %v179, %v180
    %vm182 = vcmask 7168
    %v183 = vsel %vm182, %v181, 0.0
    %184 = vadd.xlane.f32.xlu0 %v183
    %v185 = vpop.xlane.xlu0 %184
    %v186 = vrot.slane %v185, 4
    %v187 = vadd.f32 %v185, %v186
    %v188 = vrot.slane %v187, 2
    %v189 = vadd.f32 %v187, %v188
    %v190 = vrot.slane %v189, 1
    %v191 = vadd.f32 %v189, %v190
    %s192 = vtos %v191
    %v193 = vsel %vm182, %v180, 0.0
    %194 = vadd.xlane.f32.xlu0 %v193
    %v195 = vpop.xlane.xlu0 %194
    %v196 = vrot.slane %v195, 4
    %v197 = vadd.f32 %v195, %v196
    %v198 = vrot.slane %v197, 2
    %v199 = vadd.f32 %v197, %v198
    %v200 = vrot.slane %v199, 1
    %v201 = vadd.f32 %v199, %v200
    %s202 = vtos %v201
    %v203 = vstv %s202
    %v204 = vrcp.pop %v203
    %v205 = vmul.f32 %v203, %v204
    %v206 = vsub.f32 1.0, %v205
    %v207 = vmul.f32 %v204, %v206
    %v208 = vadd.f32 %v204, %v207
    %vm209 = vweird.f32 %v203
    %vm210 = vweird.f32 %v204
    %vm211 = vmor %vm209, %vm210
    %v212 = vsel %vm211, %v204, %v208
    %v213 = vand.u32 2147483647, %v203
    %vm214 = vcmp.eq.f32.partialorder %v213, 8.507059e+37
    %v215 = vand.u32 %v203, 2147483648
    %v216 = vor.u32 1.1754944e-38, %v215
    %v217 = vsel %vm214, %v216, %v212
    %s218 = vtos %v217
    %s219 = smul.f32 %s192, %s218
    %s220 = scalar_lea.smem [#allocation2], 0
    %221 = sst [smem:[%s220]] %s219
    // Predicated region
    $region30: #{tpu_custom_call.1} parent=1 // pred_check
      _
    $region31: #{tpu_custom_call.1} parent=1 // pred_check_branch
      %223 = sbr.rel (0) target = $region33
    $region32: #{tpu_custom_call.1} parent=1 // pred_region
      %225 = vsyncadd [#allocation3], 0
      %s227 = sshll.u32 %s7, 4
      %s228 = int_to_ptr.hbm [resolvable:$true] %s227
      %230 = dma.smem_to_hbm [#allocation2], 16, %s228, [#allocation3]
    $region33: #{tpu_custom_call.1} parent=1 // pred_fallthru
      _
    // Predicated region
    $region34: #{tpu_custom_call.1} parent=1 // pred_check
      _
    $region35: #{tpu_custom_call.1} parent=1 // pred_check_branch
      %232 = sbr.rel (0) target = $region37
    $region36: #{tpu_custom_call.1} parent=1 // pred_region
      %234 = dma.done [#allocation3], 16
    $region37: #{tpu_custom_call.1} parent=1 // pred_fallthru
      _
    %235 = sfence
    %236 = vsyncpa [#allocation3], 1

</llo_original>
